<compile_context>
chip_gen: v7x
topology: tpu7x:2x2x1
jax: 0.10.0
libtpu: 0.0.40
codegen_flags: <defaults>
</compile_context>

<pallas_src>
import jax
import jax.numpy as jnp
from jax.experimental import pallas as pl
from jax.experimental.pallas import tpu as pltpu


def _round_up(n: int, m: int) -> int:
    return (n + m - 1) // m * m


def decoder_forward(x, params, *, tile_b: int = 1024):
    """x: (B, num_units) float32.  params: dict from init_params."""
    B, U = x.shape
    D = params["w1"].shape[0]            # intermediate_dim (64)
    NO = params["w21"].shape[0]          # num_outputs
    eps = 1e-5

    # --- batch tiling (pad with zero rows). Zero rows contribute exactly 0
    # to sum and sum-of-squares because the (BN-cancelled) layer-1 bias has
    # been dropped, so dividing by the true B keeps the statistics exact.
    TB = min(tile_b, _round_up(B, 8))
    B_pad = _round_up(B, TB)
    nb = B_pad // TB
    xp = jnp.pad(x, ((0, B_pad - B), (0, 0))) if B_pad != B else x
    inv_b = 1.0 / float(B)

    # --- pack parameters (glue, outside the kernel) -------------------------
    w1t = params["w1"].T.astype(jnp.float32)                       # (U, D)
    gb = jnp.stack([params["gamma1"], params["beta1"]], axis=0)    # (2, D)
    w2t = jnp.concatenate(
        [params["w21"].T, params["w22"].T, params["w23"].T], axis=1
    ).astype(jnp.float32)                                          # (D, 3*NO)
    b2 = jnp.concatenate(
        [params["b21"], params["b22"], params["b23"]]
    ).reshape(1, 3 * NO).astype(jnp.float32)                       # (1, 3*NO)
    alpha = jnp.reshape(params["alpha"], (1, 1)).astype(jnp.float32)

    # ---------------- pass 1: batch stats -> fused BN scale / shift ---------
    def stats_kernel(x_ref, w1t_ref, gb_ref, ss_ref, acc_ref):
        i = pl.program_id(0)

        @pl.when(i == 0)
        def _():
            acc_ref[...] = jnp.zeros_like(acc_ref)

        z = jnp.dot(x_ref[...], w1t_ref[...],
                    preferred_element_type=jnp.float32)            # (TB, D)
        upd = jnp.concatenate(
            [jnp.sum(z, axis=0, keepdims=True),
             jnp.sum(z * z, axis=0, keepdims=True)], axis=0)       # (2, D)
        acc_ref[...] = acc_ref[...] + upd

        @pl.when(i == pl.num_programs(0) - 1)
        def _():
            gbv = gb_ref[...]
            mean = acc_ref[0:1, :] * inv_b
            var = acc_ref[1:2, :] * inv_b - mean * mean            # biased var
            scale = gbv[0:1, :] * jax.lax.rsqrt(var + eps)
            shift = gbv[1:2, :] - mean * scale
            ss_ref[...] = jnp.concatenate([scale, shift], axis=0)

    ss = pl.pallas_call(
        stats_kernel,
        out_shape=jax.ShapeDtypeStruct((2, D), jnp.float32),
        grid_spec=pltpu.PrefetchScalarGridSpec(
            num_scalar_prefetch=0,
            grid=(nb,),
            in_specs=[
                pl.BlockSpec((TB, U), lambda i: (i, 0)),
                pl.BlockSpec((U, D), lambda i: (0, 0)),
                pl.BlockSpec((2, D), lambda i: (0, 0)),
            ],
            out_specs=pl.BlockSpec((2, D), lambda i: (0, 0)),
            scratch_shapes=[pltpu.VMEM((2, D), jnp.float32)],
        ),
        compiler_params=pltpu.CompilerParams(
            dimension_semantics=("arbitrary",),
            vmem_limit_bytes=32 * 1024 * 1024),
    )(xp, w1t, gb)

    # ---------- pass 2: normalize + PReLU + fused 3-head matmul -------------
    def apply_kernel(x_ref, w1t_ref, ss_ref, alpha_ref, w2t_ref, b2_ref, o_ref):
        ssv = ss_ref[...]                                          # (2, D)
        # Fold BN scale into the layer-1 weights: U*D muls instead of TB*D.
        w1s = w1t_ref[...] * ssv[0:1, :]                           # (U, D)
        h = jnp.dot(x_ref[...], w1s,
                    preferred_element_type=jnp.float32) + ssv[1:2, :]
        a = alpha_ref[0, 0]                                        # PReLU alpha
        h = jnp.where(h >= 0, h, a * h)
        o = jnp.dot(h, w2t_ref[...],
                    preferred_element_type=jnp.float32) + b2_ref[...]
        o_ref[...] = o.astype(o_ref.dtype)

    out = pl.pallas_call(
        apply_kernel,
        out_shape=jax.ShapeDtypeStruct((B_pad, 3 * NO), jnp.float32),
        grid_spec=pltpu.PrefetchScalarGridSpec(
            num_scalar_prefetch=0,
            grid=(nb,),
            in_specs=[
                pl.BlockSpec((TB, U), lambda i: (i, 0)),
                pl.BlockSpec((U, D), lambda i: (0, 0)),
                pl.BlockSpec((2, D), lambda i: (0, 0)),
                pl.BlockSpec(memory_space=pltpu.MemorySpace.SMEM),
                pl.BlockSpec((D, 3 * NO), lambda i: (0, 0)),
                pl.BlockSpec((1, 3 * NO), lambda i: (0, 0)),
            ],
            out_specs=pl.BlockSpec((TB, 3 * NO), lambda i: (i, 0)),
        ),
        compiler_params=pltpu.CompilerParams(
            dimension_semantics=("parallel",),
            vmem_limit_bytes=32 * 1024 * 1024),
    )(xp, w1t, ss, alpha, w2t, b2)

    out = out[:B]
    return out[:, :NO], out[:, NO:2 * NO], out[:, 2 * NO:]


def init_params(key, num_outputs, num_units=32, intermediate_dim=64):
    """Deterministic synthetic init matching the PyTorch Decoder shapes/inits."""
    ks = jax.random.split(key, 8)

    def xavier_uniform(k, fan_out, fan_in):
        bound = jnp.sqrt(6.0 / (fan_in + fan_out))
        return jax.random.uniform(k, (fan_out, fan_in), jnp.float32, -bound, bound)

    def linear_bias(k, fan_out, fan_in):
        bound = 1.0 / jnp.sqrt(fan_in)
        return jax.random.uniform(k, (fan_out,), jnp.float32, -bound, bound)

    return {
        "w1": xavier_uniform(ks[0], intermediate_dim, num_units),
        "b1": linear_bias(ks[1], intermediate_dim, num_units),  # cancelled by BN
        "gamma1": jnp.ones((intermediate_dim,), jnp.float32),
        "beta1": jnp.zeros((intermediate_dim,), jnp.float32),
        "alpha": jnp.asarray(0.25, jnp.float32),                # PReLU default
        "w21": xavier_uniform(ks[2], num_outputs, intermediate_dim),
        "b21": linear_bias(ks[3], num_outputs, intermediate_dim),
        "w22": xavier_uniform(ks[4], num_outputs, intermediate_dim),
        "b22": linear_bias(ks[5], num_outputs, intermediate_dim),
        "w23": xavier_uniform(ks[6], num_outputs, intermediate_dim),
        "b23": linear_bias(ks[7], num_outputs, intermediate_dim),
    }


def decoder_ref(x, params):
    """Pure-JAX reference (faithful PyTorch semantics, incl. the dead b1)."""
    z1 = x @ params["w1"].T + params["b1"]
    m = z1.mean(0, keepdims=True)
    v = ((z1 - m) ** 2).mean(0, keepdims=True)          # biased var (training BN)
    h = (z1 - m) / jnp.sqrt(v + 1e-5) * params["gamma1"] + params["beta1"]
    h = jnp.where(h >= 0, h, params["alpha"] * h)
    r1 = h @ params["w21"].T + params["b21"]
    r2 = h @ params["w22"].T + params["b22"]
    r3 = h @ params["w23"].T + params["b23"]
    return r1, r2, r3


if __name__ == "__main__":
    B, NUM_UNITS, NUM_OUTPUTS = 8, 32, 16

    key = jax.random.PRNGKey(0)
    kx, kp = jax.random.split(key)
    x = jax.random.normal(kx, (B, NUM_UNITS), jnp.float32)
    params = init_params(kp, NUM_OUTPUTS, NUM_UNITS)

    r1, r2, r3 = decoder_forward(x, params)
    (r1, r2, r3) = jax.block_until_ready((r1, r2, r3))

    ref1, ref2, ref3 = decoder_ref(x, params)
    assert r1.shape == (B, NUM_OUTPUTS)
    assert r2.shape == (B, NUM_OUTPUTS)
    assert r3.shape == (B, NUM_OUTPUTS)
    assert jnp.allclose(r1, ref1, atol=1e-4, rtol=1e-4)
    assert jnp.allclose(r2, ref2, atol=1e-4, rtol=1e-4)
    assert jnp.allclose(r3, ref3, atol=1e-4, rtol=1e-4)

    print("KERNEL_OK")
</pallas_src>

<mosaic_0001>
module attributes {stable_mosaic.version = 11 : i64} {
  func.func @stats_kernel(%arg0: i32, %arg1: memref<8x32xf32, #tpu.memory_space<vmem>>, %arg2: memref<32x64xf32, #tpu.memory_space<vmem>>, %arg3: memref<2x64xf32, #tpu.memory_space<vmem>>, %arg4: memref<2x64xf32, #tpu.memory_space<vmem>>, %arg5: memref<2x64xf32, #tpu.memory_space<vmem>>) attributes {dimension_semantics = [#tpu.dimension_semantics<arbitrary>], iteration_bounds = array<i64: 1>, scalar_prefetch = 0 : i64, scratch_operands = 1 : i64, tpu.core_type = #tpu.core_type<tc>, window_params = [{transform_indices = @transform_0, window_bounds = array<i64: 8, 32>}, {pipeline_mode = #tpu.pipeline_mode<synchronous>, transform_indices = @transform_1, window_bounds = array<i64: 32, 64>}, {pipeline_mode = #tpu.pipeline_mode<synchronous>, transform_indices = @transform_2, window_bounds = array<i64: 2, 64>}, {pipeline_mode = #tpu.pipeline_mode<synchronous>, transform_indices = @transform_3, window_bounds = array<i64: 2, 64>}]} {
    %c0_i32 = arith.constant 0 : i32
    %0 = arith.cmpi eq, %arg0, %c0_i32 : i32
    %1 = arith.extui %0 : i1 to i32
    %c0_i32_0 = arith.constant 0 : i32
    %2 = arith.cmpi ne, %1, %c0_i32_0 : i32
    scf.if %2 {
      %cst_12 = arith.constant 0.000000e+00 : f32
      %18 = vector.broadcast %cst_12 : f32 to vector<2x64xf32>
      %c0_13 = arith.constant 0 : index
      %c0_14 = arith.constant 0 : index
      %19 = vector.load %arg5[%c0_13, %c0_14] : memref<2x64xf32, #tpu.memory_space<vmem>>, vector<2x64xf32>
      tpu.vector_store %arg5[%c0_13, %c0_14], %18 {strides = array<i32>} : memref<2x64xf32, #tpu.memory_space<vmem>>, vector<2x64xf32>,
    } else {
    }
    %c0 = arith.constant 0 : index
    %c0_1 = arith.constant 0 : index
    %3 = vector.load %arg1[%c0, %c0_1] : memref<8x32xf32, #tpu.memory_space<vmem>>, vector<8x32xf32>
    %c0_2 = arith.constant 0 : index
    %c0_3 = arith.constant 0 : index
    %4 = vector.load %arg2[%c0_2, %c0_3] : memref<32x64xf32, #tpu.memory_space<vmem>>, vector<32x64xf32>
    %cst = arith.constant dense<0.000000e+00> : vector<8x64xf32>
    %5 = tpu.matmul %3, %4, %cst {dimension_numbers = #tpu.dot_dimension_numbers<[1], [0], [0], [1], [0, 0, 1, 1], [], []>} : vector<8x32xf32>, vector<32x64xf32>, vector<8x64xf32> -> vector<8x64xf32>
    %cst_4 = arith.constant dense<0.000000e+00> : vector<64xf32>
    %6 = vector.multi_reduction <add>, %5, %cst_4 [0] : vector<8x64xf32> to vector<64xf32>
    %7 = vector.shape_cast %6 : vector<64xf32> to vector<1x64xf32>
    %8 = arith.mulf %5, %5 : vector<8x64xf32>
    %cst_5 = arith.constant dense<0.000000e+00> : vector<64xf32>
    %9 = vector.multi_reduction <add>, %8, %cst_5 [0] : vector<8x64xf32> to vector<64xf32>
    %10 = vector.shape_cast %9 : vector<64xf32> to vector<1x64xf32>
    %11 = tpu.concatenate %7, %10 in 0 : vector<1x64xf32>, vector<1x64xf32> -> vector<2x64xf32>
    %c0_6 = arith.constant 0 : index
    %c0_7 = arith.constant 0 : index
    %12 = vector.load %arg5[%c0_6, %c0_7] : memref<2x64xf32, #tpu.memory_space<vmem>>, vector<2x64xf32>
    %13 = arith.addf %12, %11 : vector<2x64xf32>
    %c0_8 = arith.constant 0 : index
    %c0_9 = arith.constant 0 : index
    %14 = vector.load %arg5[%c0_8, %c0_9] : memref<2x64xf32, #tpu.memory_space<vmem>>, vector<2x64xf32>
    tpu.vector_store %arg5[%c0_8, %c0_9], %13 {strides = array<i32>} : memref<2x64xf32, #tpu.memory_space<vmem>>, vector<2x64xf32>,
    %c0_i32_10 = arith.constant 0 : i32
    %15 = arith.cmpi eq, %arg0, %c0_i32_10 : i32
    %16 = arith.extui %15 : i1 to i32
    %c0_i32_11 = arith.constant 0 : i32
    %17 = arith.cmpi ne, %16, %c0_i32_11 : i32
    scf.if %17 {
      %c0_12 = arith.constant 0 : index
      %c0_13 = arith.constant 0 : index
      %18 = vector.load %arg3[%c0_12, %c0_13] : memref<2x64xf32, #tpu.memory_space<vmem>>, vector<2x64xf32>
      %c0_14 = arith.constant 0 : index
      %c0_15 = arith.constant 0 : index
      %19 = vector.load %arg5[%c0_14, %c0_15] : memref<2x64xf32, #tpu.memory_space<vmem>>, vector<1x64xf32>
      %cst_16 = arith.constant 1.250000e-01 : f32
      %20 = vector.broadcast %cst_16 : f32 to vector<1x64xf32>
      %21 = arith.mulf %19, %20 : vector<1x64xf32>
      %c1 = arith.constant 1 : index
      %c0_17 = arith.constant 0 : index
      %22 = vector.load %arg5[%c1, %c0_17] : memref<2x64xf32, #tpu.memory_space<vmem>>, vector<1x64xf32>
      %cst_18 = arith.constant 1.250000e-01 : f32
      %23 = vector.broadcast %cst_18 : f32 to vector<1x64xf32>
      %24 = arith.mulf %22, %23 : vector<1x64xf32>
      %25 = arith.mulf %21, %21 : vector<1x64xf32>
      %26 = arith.subf %24, %25 : vector<1x64xf32>
      %27 = vector.extract_strided_slice %18 {offsets = [0, 0], sizes = [1, 64], strides = [1, 1]} : vector<2x64xf32> to vector<1x64xf32>
      %cst_19 = arith.constant 9.99999974E-6 : f32
      %28 = vector.broadcast %cst_19 : f32 to vector<1x64xf32>
      %29 = arith.addf %26, %28 : vector<1x64xf32>
      %30 = math.rsqrt %29 : vector<1x64xf32>
      %31 = arith.mulf %27, %30 : vector<1x64xf32>
      %32 = vector.extract_strided_slice %18 {offsets = [1, 0], sizes = [1, 64], strides = [1, 1]} : vector<2x64xf32> to vector<1x64xf32>
      %33 = arith.mulf %21, %31 : vector<1x64xf32>
      %34 = arith.subf %32, %33 : vector<1x64xf32>
      %35 = tpu.concatenate %31, %34 in 0 : vector<1x64xf32>, vector<1x64xf32> -> vector<2x64xf32>
      %c0_20 = arith.constant 0 : index
      %c0_21 = arith.constant 0 : index
      %36 = vector.load %arg4[%c0_20, %c0_21] : memref<2x64xf32, #tpu.memory_space<vmem>>, vector<2x64xf32>
      tpu.vector_store %arg4[%c0_20, %c0_21], %35 {strides = array<i32>} : memref<2x64xf32, #tpu.memory_space<vmem>>, vector<2x64xf32>,
    } else {
    }
    return
  }
  func.func @transform_0(%arg0: i32) -> (i32, i32) {
    %c0_i32 = arith.constant 0 : i32
    %c0_i32_0 = arith.constant 0 : i32
    return %arg0, %c0_i32 : i32, i32
  }
  func.func @transform_1(%arg0: i32) -> (i32, i32) {
    %c0_i32 = arith.constant 0 : i32
    %c0_i32_0 = arith.constant 0 : i32
    %c0_i32_1 = arith.constant 0 : i32
    return %c0_i32, %c0_i32_0 : i32, i32
  }
  func.func @transform_2(%arg0: i32) -> (i32, i32) {
    %c0_i32 = arith.constant 0 : i32
    %c0_i32_0 = arith.constant 0 : i32
    %c0_i32_1 = arith.constant 0 : i32
    return %c0_i32, %c0_i32_0 : i32, i32
  }
  func.func @transform_3(%arg0: i32) -> (i32, i32) {
    %c0_i32 = arith.constant 0 : i32
    %c0_i32_0 = arith.constant 0 : i32
    %c0_i32_1 = arith.constant 0 : i32
    return %c0_i32, %c0_i32_0 : i32, i32
  }
}

</mosaic_0001>

<llo_original>
// kernel: tpu_custom_call.1
$region0: #{tpu_custom_call.1}
  #allocation0 [shape = 'u32[]', space=smem, size = 0x4, offset = 0x4, fixed_abs, tag = 'smem constant byte address 0x4 - core index']
  #allocation1 [shape = 'u32[144,128]{1,0:T(1,128)}', space=vmem, size = 0x12000, scoped, tag = 'internal scratch']
  #allocation2 [shape = 'f32[2,64]{1,0:T(2,128)}', space=vmem, size = 0x400, scoped, tag = 'scratch operand']
  %s0 = inlined_call_operand.hbm [shape: f32[8,32], index: 0, kind: input, shape index: {}]
  %s1 = inlined_call_operand.hbm [shape: f32[32,64], index: 1, kind: input, shape index: {}]
  %s2 = inlined_call_operand.vmem [shape: f32[2,64], index: 2, kind: input, shape index: {}]
  %s3 = inlined_call_operand.hbm [shape: f32[2,64], index: 3, kind: output, shape index: {}]
  %s4 = sld [smem:[#allocation0]]
  $region38: #{tpu_custom_call.1} parent=0
    _
  %s6 = ssub.s32 1, %s4
  %s7 = scalar_select 0, %s6, %s4
  $region1: #{tpu_custom_call.1} parent=0
    #allocation3 [shape = 'u8[4096]{0}', space=vmem, size = 0x1000, scoped, tag = 'input window, operand 0, single buffered']
    #allocation4 [shape = 's32[1]{0}', space=sflag, size = 0x4, scoped, tag = 'scoped memory for tpu_custom_call.1']
    #allocation5 [shape = 's32[1]{0}', space=sflag, size = 0x4, scoped, tag = 'scoped memory for tpu_custom_call.1']
    #allocation6 [shape = 'u8[16384]{0}', space=vmem, size = 0x4000, scoped, tag = 'input window, operand 1, single buffered']
    #allocation7 [shape = 's32[1]{0}', space=sflag, size = 0x4, scoped, tag = 'scoped memory for tpu_custom_call.1']
    #allocation8 [shape = 'u8[1024]{0}', space=vmem, size = 0x400, scoped, tag = 'output window, operand 0, single buffered']
    %8 = vsyncpa [#allocation4], 0
    %9 = vsyncpa [#allocation7], 0
    %10 = vsyncpa [#allocation5], 0
    // Predicated region
    $region2: #{tpu_custom_call.1} parent=1 // pred_check
      _
    $region3: #{tpu_custom_call.1} parent=1 // pred_check_branch
      %12 = sbr.rel (0) target = $region5
    $region4: #{tpu_custom_call.1} parent=1 // pred_region
      %s14 = ssub.s32 128, 128
      %15 = vsyncadd [#allocation4], %s14
      %s17 = sshll.u32 [#allocation3], 4
      %s18 = int_to_ptr.vmem [resolvable:$true] %s17
      %20 = dma.hbm_to_vmem [thread:$0]  %s0, 128, %s18, [#allocation4]
    $region5: #{tpu_custom_call.1} parent=1 // pred_fallthru
      _
    // Predicated region
    $region6: #{tpu_custom_call.1} parent=1 // pred_check
      _
    $region7: #{tpu_custom_call.1} parent=1 // pred_check_branch
      %22 = sbr.rel (0) target = $region9
    $region8: #{tpu_custom_call.1} parent=1 // pred_region
      %s24 = ssub.s32 512, 512
      %25 = vsyncadd [#allocation7], %s24
      %s26 = sshll.u32 [#allocation6], 4
      %s27 = int_to_ptr.vmem [resolvable:$true] %s26
      %32 = dma.hbm_to_vmem [thread:$0]  %s1, 512, %s27, [#allocation7], 128, 128, 8
    $region9: #{tpu_custom_call.1} parent=1 // pred_fallthru
      _
    // Predicated region
    $region10: #{tpu_custom_call.1} parent=1 // pred_check
      _
    $region11: #{tpu_custom_call.1} parent=1 // pred_check_branch
      %34 = sbr.rel (0) target = $region13
    $region12: #{tpu_custom_call.1} parent=1 // pred_region
      _
    $region13: #{tpu_custom_call.1} parent=1 // pred_fallthru
      _
    // Predicated region
    $region14: #{tpu_custom_call.1} parent=1 // pred_check
      _
    $region15: #{tpu_custom_call.1} parent=1 // pred_check_branch
      %36 = sbr.rel (0) target = $region17
    $region16: #{tpu_custom_call.1} parent=1 // pred_region
      %37 = dma.done [#allocation4], 128
    $region17: #{tpu_custom_call.1} parent=1 // pred_fallthru
      _
    // Predicated region
    $region18: #{tpu_custom_call.1} parent=1 // pred_check
      _
    $region19: #{tpu_custom_call.1} parent=1 // pred_check_branch
      %39 = sbr.rel (0) target = $region21
    $region20: #{tpu_custom_call.1} parent=1 // pred_region
      %40 = dma.done [#allocation7], 512
    $region21: #{tpu_custom_call.1} parent=1 // pred_fallthru
      _
    %p41 = scmp.eq.s32.totalorder 0, 0
    // Predicated region
    $region22: #{tpu_custom_call.1} parent=1 // pred_check
      %p42 = pneg %p41
    $region23: #{tpu_custom_call.1} parent=1 // pred_check_branch
      %44 = sbr.rel (%p42) target = $region25
    $region24: #{tpu_custom_call.1} parent=1 // pred_region
      %vm45 = vcmask 517120
      %46 = vst.msk [vmem:[#allocation2] sm:$0x3] %vm45, 0.0
    $region25: #{tpu_custom_call.1} parent=1 // pred_fallthru
      _
    %v47 = vld [vmem:[#allocation3] sm:$0xff]
    %v48 = vld [vmem:[#allocation6] sm:$0xff]
    %v49 = vld [vmem:[#allocation6 + $0x8] sm:$0xff]
    %v50 = vld [vmem:[#allocation6 + $0x10] sm:$0xff]
    %v51 = vld [vmem:[#allocation6 + $0x18] sm:$0xff]
    %vm52 = vcmask 261120
    %v54 = vsel %vm52, %v47, 0
    %56 = vmatprep.subr.mxu0 0.0
    %57 = vmatpush1.msra.mxu0 %v48
    %58 = vmatprep.subr.mxu0 0.0
    %59 = vmatpush1.msra.mxu0 %v49
    %60 = vmatprep.subr.mxu0 0.0
    %61 = vmatpush1.msra.mxu0 %v50
    %62 = vmatprep.subr.mxu0 0.0
    %63 = vmatpush1.msra.mxu0 %v51
    %64 = vmatprep.subr.mxu0 0.0
    %65 = vmatpush1.msra.mxu0 0.0
    %66 = vmatprep.subr.mxu0 0.0
    %67 = vmatpush1.msra.mxu0 0.0
    %68 = vmatprep.subr.mxu0 0.0
    %69 = vmatpush1.msra.mxu0 0.0
    %70 = vmatprep.subr.mxu0 0.0
    %71 = vmatpush1.msra.mxu0 0.0
    %72 = vmatprep.subr.mxu0 0.0
    %73 = vmatpush1.msra.mxu0 0.0
    %74 = vmatprep.subr.mxu0 0.0
    %75 = vmatpush1.msra.mxu0 0.0
    %76 = vmatprep.subr.mxu0 0.0
    %77 = vmatpush1.msra.mxu0 0.0
    %78 = vmatprep.subr.mxu0 0.0
    %79 = vmatpush1.msra.mxu0 0.0
    %80 = vmatprep.subr.mxu0 0.0
    %81 = vmatpush1.msra.mxu0 0.0
    %82 = vmatprep.subr.mxu0 0.0
    %83 = vmatpush1.msra.mxu0 0.0
    %84 = vmatprep.subr.mxu0 0.0
    %85 = vmatpush1.msra.mxu0 0.0
    %86 = vmatprep.subr.mxu0 0.0
    %87 = vmatpush1.msra.mxu0 0.0
    %88 = vmatprep.subr.mxu0 0.0
    %89 = vmatpush1.msra.mxu0 0.0
    %90 = vmatprep.subr.mxu0 0.0
    %91 = vmatpush1.msra.mxu0 0.0
    %92 = vmatprep.subr.mxu0 0.0
    %93 = vmatpush1.msra.mxu0 0.0
    %94 = vmatprep.subr.mxu0 0.0
    %95 = vmatpush1.msra.mxu0 0.0
    %96 = vmatprep.subr.mxu0 0.0
    %97 = vmatpush1.msra.mxu0 0.0
    %98 = vmatprep.subr.mxu0 0.0
    %99 = vmatpush1.msra.mxu0 0.0
    %100 = vmatprep.subr.mxu0 0.0
    %101 = vmatpush1.msra.mxu0 0.0
    %102 = vmatprep.subr.mxu0 0.0
    %103 = vmatpush1.msra.mxu0 0.0
    %104 = vmatprep.subr.mxu0 0.0
    %105 = vmatpush1.msra.mxu0 0.0
    %106 = vmatprep.subr.mxu0 0.0
    %107 = vmatpush1.msra.mxu0 0.0
    %108 = vmatprep.subr.mxu0 0.0
    %109 = vmatpush1.msra.mxu0 0.0
    %110 = vmatprep.subr.mxu0 0.0
    %111 = vmatpush1.msra.mxu0 0.0
    %112 = vmatprep.subr.mxu0 0.0
    %113 = vmatpush1.msra.mxu0 0.0
    %114 = vmatprep.subr.mxu0 0.0
    %115 = vmatpush1.msra.mxu0 0.0
    %116 = vmatprep.subr.mxu0 0.0
    %117 = vmatpush1.msra.mxu0 0.0
    %118 = vmatprep.subr.mxu0 0.0
    %119 = vmatpush1.msra.mxu0 0.0
    %120 = vmatprep.mubr.f32.mxu0 0.0
    %121 = vmatmul.mubr.f32.gmra.mrb[0].mxu0 %v54
    %v122 = vpop.f32.mrb[0].mxu0
    %v123 = vadd.f32 0.0, %v122
    %v124 = vpop.f32.mrb[0].mxu0
    %125 = vdwg.mxu0
    %vm126 = vcmask 523264
    %v127 = vsel %vm126, %v123, 0.0
    %v128 = vrot.slane %v127, 4
    %v129 = vadd.f32 %v127, %v128
    %v130 = vrot.slane %v129, 2
    %v131 = vadd.f32 %v129, %v130
    %v132 = vrot.slane %v131, 1
    %v133 = vadd.f32 %v131, %v132
    %v134 = vmul.f32 %v123, %v123
    %v135 = vsel %vm126, %v134, 0.0
    %v136 = vrot.slane %v135, 4
    %v137 = vadd.f32 %v135, %v136
    %v138 = vrot.slane %v137, 2
    %v139 = vadd.f32 %v137, %v138
    %v140 = vrot.slane %v139, 1
    %v141 = vadd.f32 %v139, %v140
    %vm142 = vcmask 1040384
    %v143 = vsel %vm142, %v133, %v141
    %v144 = vld [vmem:[#allocation2] sm:$0x3]
    %v145 = vadd.f32 %v144, %v143
    %vm146 = vcmask 517120
    %147 = vst.msk [vmem:[#allocation2] sm:$0x3] %vm146, %v145
    // Predicated region
    $region26: #{tpu_custom_call.1} parent=1 // pred_check
      %p148 = pneg %p41
    $region27: #{tpu_custom_call.1} parent=1 // pred_check_branch
      %150 = sbr.rel (%p148) target = $region29
    $region28: #{tpu_custom_call.1} parent=1 // pred_region
      %v151 = vld [vmem:[%s2] sm:$0x3]
      %v152 = vld [vmem:[#allocation2] sm:$0x1]
      %v153 = vmul.f32 %v152, 0.125
      %v154 = vld [vmem:[#allocation2 + $0x1] sm:$0x1]
      %v155 = vmul.f32 %v154, 0.125
      %v156 = vmul.f32 %v153, %v153
      %v157 = vsub.f32 %v155, %v156
      %v158 = vadd.f32 %v157, 1e-05
      %v159 = vrsqrt.pop %v158
      %v160 = vmul.f32 %v151, %v159
      %v161 = vmul.f32 %v153, %v160
      %v163 = vrot.slane %v161, 7
      %v165 = vsub.f32 %v151, %v163
      %v166 = vsel %vm142, %v160, %v165
      %167 = vst.msk [vmem:[#allocation8] sm:$0x3] %vm146, %v166
    $region29: #{tpu_custom_call.1} parent=1 // pred_fallthru
      _
    // Predicated region
    $region30: #{tpu_custom_call.1} parent=1 // pred_check
      _
    $region31: #{tpu_custom_call.1} parent=1 // pred_check_branch
      %169 = sbr.rel (0) target = $region33
    $region32: #{tpu_custom_call.1} parent=1 // pred_region
      %s171 = ssub.s32 32, 32
      %172 = vsyncadd [#allocation5], %s171
      %s174 = sshll.u32 [#allocation8], 4
      %s175 = int_to_ptr.vmem [resolvable:$true] %s174
      %177 = dma.vmem_to_hbm [thread:$0]  %s175, 32, %s3, [#allocation5]
    $region33: #{tpu_custom_call.1} parent=1 // pred_fallthru
      _
    // Predicated region
    $region34: #{tpu_custom_call.1} parent=1 // pred_check
      _
    $region35: #{tpu_custom_call.1} parent=1 // pred_check_branch
      %179 = sbr.rel (0) target = $region37
    $region36: #{tpu_custom_call.1} parent=1 // pred_region
      %180 = dma.done [#allocation5], 32
    $region37: #{tpu_custom_call.1} parent=1 // pred_fallthru
      _
    %181 = vsyncpa [#allocation4], 1
    %182 = vsyncpa [#allocation7], 1
    %183 = vsyncpa [#allocation5], 1

</llo_original>
